<compile_context>
chip_gen: v5e
topology: v5e:2x2
jax: 0.10.0
libtpu: 0.0.40
codegen_flags: <defaults>
</compile_context>

<pallas_src>
import math

import jax
import jax.numpy as jnp
from jax.experimental import pallas as pl
from jax.experimental.pallas import tpu as pltpu

# MXU operand dtype: bf16 operands, f32 accumulation (f32 matmul is emulated
# via multiple bf16 passes on v6e/v7x, so this is ~3-4x MXU throughput).
MXU_DT = jnp.bfloat16


# ----------------------------------------------------------------------------
# Pallas kernel 1: batched block-complex 2-D DFT.
#
#   Per grid step: Bt complex planes, Z_b = F @ z_b @ G  (complex), done as two
#   real MXU matmuls on block-complex matrices:
#     stage 1:  [Re | Im](z@G)      = z_rows(Bt*H, 2W) @ Gc(2W, 2W)
#     relayout: rows-packed planes -> lanes-packed planes (static slices/concat)
#     stage 2:  [Re ; Im](F@(z@G))  = Fc(2H, 2H) @ a2(2H, Bt*W)   (lane-dense store)
# ----------------------------------------------------------------------------
def _make_dft2_kernel(bt, h, w):
    def kernel(z_ref, gc_ref, fc_ref, o_ref):
        # z_ref: (bt*h, 2w) f32, row = (plane, h), cols = [real | imag]
        a = jnp.dot(z_ref[...].astype(MXU_DT), gc_ref[...],
                    preferred_element_type=jnp.float32)          # (bt*h, 2w) = [Re | Im] of z@G
        ar, ai = a[:, :w], a[:, w:]                               # (bt*h, w) each

        def to_cols(m):  # (bt*h, w) -> (h, bt*w): planes move from rows to lanes
            return jnp.concatenate(
                [m[b * h:(b + 1) * h, :] for b in range(bt)], axis=1)

        a2 = jnp.concatenate([to_cols(ar), to_cols(ai)], axis=0)  # (2h, bt*w)
        # Second (H-axis) transform; store is lane-dense (last dim = bt*w).
        o_ref[...] = jnp.dot(fc_ref[...], a2.astype(MXU_DT),
                             preferred_element_type=jnp.float32)  # (2h, bt*w)
    return kernel


def _dft_block_matrices(h, w, inverse):
    """Block-complex DFT matrices Fc (left, 2H x 2H) and Gc (right, 2W x 2W)."""
    sign = 1.0 if inverse else -1.0

    def mats(n, scale):
        k = jnp.arange(n, dtype=jnp.float32)
        th = sign * 2.0 * jnp.pi * jnp.outer(k, k) / n
        return jnp.cos(th) * scale, jnp.sin(th) * scale

    fr, fi = mats(h, 1.0)
    gr, gi = mats(w, 1.0 / (h * w) if inverse else 1.0)   # 'backward' normalization
    fc = jnp.concatenate([jnp.concatenate([fr, -fi], axis=1),
                          jnp.concatenate([fi, fr], axis=1)], axis=0)   # left:  F @ z
    gc = jnp.concatenate([jnp.concatenate([gr, gi], axis=1),
                          jnp.concatenate([-gi, gr], axis=1)], axis=0)  # right: z @ G
    return fc.astype(MXU_DT), gc.astype(MXU_DT)


def _pick_plane_tile(b, h, w, target_bytes=1 << 20):
    """Planes per grid step: ~1 MiB f32 tiles with lane/sublane-aligned blocks."""
    per_plane = 2 * h * w * 4
    want = max(1, target_bytes // per_plane)
    want = min(want, 64)            # cap the (static) relayout unroll
    if want >= b:
        return b, b                 # single tile: block == full array, no constraint
    q_lane = 128 // math.gcd(w, 128)   # ensures (bt*w) % 128 == 0
    q_sub = 8 // math.gcd(h, 8)        # ensures (bt*h) % 8 == 0
    q = (q_lane * q_sub) // math.gcd(q_lane, q_sub)
    bt = max(q, (want // q) * q)
    if bt >= b:
        return b, b
    b_pad = ((b + bt - 1) // bt) * bt
    return bt, b_pad


def pallas_dft2(zrows, h, w, inverse):
    """2-D DFT (or inverse) of B complex planes.

    zrows : (B*h, 2*w) f32; row (b*h + y), cols [real(y, :) | imag(y, :)].
    returns (2*h, B*w) f32; rows [real(k1, :) ; imag(k1, :)], planes along lanes.
    """
    bh, tw = zrows.shape
    assert tw == 2 * w and bh % h == 0
    b = bh // h
    fc, gc = _dft_block_matrices(h, w, inverse)
    bt, b_pad = _pick_plane_tile(b, h, w)
    if b_pad != b:                          # pad with zero planes (DFT(0) == 0)
        zrows = jnp.pad(zrows, ((0, (b_pad - b) * h), (0, 0)))
    nb = b_pad // bt

    out = pl.pallas_call(
        _make_dft2_kernel(bt, h, w),
        out_shape=jax.ShapeDtypeStruct((2 * h, b_pad * w), jnp.float32),
        grid=(nb,),
        in_specs=[
            pl.BlockSpec((bt * h, 2 * w), lambda i: (i, 0)),   # z tile
            pl.BlockSpec((2 * w, 2 * w), lambda i: (0, 0)),    # Gc (resident)
            pl.BlockSpec((2 * h, 2 * h), lambda i: (0, 0)),    # Fc (resident)
        ],
        out_specs=pl.BlockSpec((2 * h, bt * w), lambda i: (0, i)),
        compiler_params=pltpu.CompilerParams(dimension_semantics=("parallel",)),
    )(zrows, gc, fc)
    return out[:, : b * w] if b_pad != b else out


# ----------------------------------------------------------------------------
# Pallas kernel 2: ConvTranspose2d(kernel=2, stride=2, bias=False) as a
# transposed channel matmul  Y(4*Cout, M) = W2(4*Cout, Cin) @ X(Cin, M),
# tiled over M so stores are full-width and the grid pipelines / megacores.
# ----------------------------------------------------------------------------
def _convT_kernel(w_ref, x_ref, o_ref):
    o_ref[...] = jnp.dot(w_ref[...], x_ref[...].astype(MXU_DT),
                         preferred_element_type=jnp.float32)


def pallas_conv_transpose_matmul(w2, x2, tm=2048):
    """w2: (Ko, Cin) bf16, x2: (Cin, M) f32  ->  (Ko, M) f32."""
    ko, cin = w2.shape
    cin2, m = x2.shape
    assert cin2 == cin
    if m <= tm:
        tm_eff, m_pad = m, m
    else:
        tm_eff = tm
        m_pad = ((m + tm - 1) // tm) * tm
        if m_pad != m:
            x2 = jnp.pad(x2, ((0, 0), (0, m_pad - m)))
    y = pl.pallas_call(
        _convT_kernel,
        out_shape=jax.ShapeDtypeStruct((ko, m_pad), jnp.float32),
        grid=(m_pad // tm_eff,),
        in_specs=[pl.BlockSpec((ko, cin), lambda i: (0, 0)),       # weight resident
                  pl.BlockSpec((cin, tm_eff), lambda i: (0, i))],  # pixel tile
        out_specs=pl.BlockSpec((ko, tm_eff), lambda i: (0, i)),
        compiler_params=pltpu.CompilerParams(dimension_semantics=("parallel",)),
    )(w2, x2)
    return y[:, :m] if m_pad != m else y


# ----------------------------------------------------------------------------
# Forward pass (wrapper glue is pure layout: reshapes / transposes / concat).
# ----------------------------------------------------------------------------
def multidomain_conv_transpose2d(image, w_image, w_kspace):
    """MultiDomainConvTranspose2d forward (NCHW float32).

    image    : (N, C, H, W), channel pairs (2p, 2p+1) = (real, imag)
    w_image  : (C, out_channels//2, 2, 2)   PyTorch ConvTranspose2d weight layout
    w_kspace : (C, out_channels//2, 2, 2)
    """
    N, C, H, W = image.shape
    assert C % 2 == 0, "channels must be (real, imag) interleaved pairs"
    P = C // 2
    cin_i, couti, kh_i, kw_i = w_image.shape
    cin_k, coutk, kh_k, kw_k = w_kspace.shape
    assert (kh_i, kw_i, kh_k, kw_k) == (2, 2, 2, 2), \
        "only kernel_size=2, stride=2, padding=0, bias=False is supported"
    assert cin_i == C and cin_k == C and coutk % 2 == 0

    # ---- k-space branch: fft2 -> kspace_conv -> ifft2 ------------------------
    # fft2 input slab: planes (n,p) stacked along rows, [real | imag] along lanes.
    zrows = (image.reshape(N, P, 2, H, W)
                  .transpose(0, 1, 3, 2, 4)
                  .reshape(N * P * H, 2 * W))
    kslab = pallas_dft2(zrows, H, W, inverse=False)            # (2H, N*P*W)

    # conv input: (Cin, M) with row = 2p + reim, col = (n*H + k1)*W + k2.
    kx = (kslab.reshape(2, H, N, P, W)
               .transpose(3, 0, 2, 1, 4)
               .reshape(C, N * H * W))
    wk2 = jnp.transpose(w_kspace, (2, 3, 1, 0)).reshape(4 * coutk, C).astype(MXU_DT)
    ky = pallas_conv_transpose_matmul(wk2, kx)                 # (4*coutk, N*H*W)

    # ifft2 of the conv output, viewed as (N, coutk, 2H, 2W) with coutk//2 pairs.
    H2, W2, P2 = 2 * H, 2 * W, coutk // 2
    brows = (ky.reshape(2, 2, P2, 2, N, H, W)                  # (di, dj, p2, reim, n, k1, k2)
               .transpose(4, 2, 5, 0, 3, 6, 1)                 # (n, p2, k1, di, reim, k2, dj)
               .reshape(N * P2 * H2, 2 * W2))
    bslab = pallas_dft2(brows, H2, W2, inverse=True)           # (2*H2, N*P2*W2)
    backward = (bslab.reshape(2, H2, N, P2, W2)
                     .transpose(2, 3, 0, 1, 4)
                     .reshape(N, 2 * P2, H2, W2))

    # ---- image branch ---------------------------------------------------------
    ix = image.transpose(1, 0, 2, 3).reshape(C, N * H * W)
    wi2 = jnp.transpose(w_image, (2, 3, 1, 0)).reshape(4 * couti, C).astype(MXU_DT)
    iy = pallas_conv_transpose_matmul(wi2, ix)                 # (4*couti, N*H*W)
    img = (iy.reshape(2, 2, couti, N, H, W)                    # (di, dj, cout, n, h, w)
             .transpose(3, 2, 4, 0, 5, 1)                      # (n, cout, h, di, w, dj)
             .reshape(N, couti, H2, W2))

    return jnp.concatenate([img, backward], axis=1)            # coil_dim = 1


# ----------------------------------------------------------------------------
# Pure-JAX reference (jnp.fft + einsum) for the correctness check.
# ----------------------------------------------------------------------------
def reference_forward(image, w_image, w_kspace):
    N, C, H, W = image.shape

    def convt(x, w):
        n_, ci, hh, ww = x.shape
        co = w.shape[1]
        y = jnp.einsum('ncij,copq->noipjq', x, w)
        return y.reshape(n_, co, 2 * hh, 2 * ww)

    z = image[:, 0::2].astype(jnp.complex64) + 1j * image[:, 1::2].astype(jnp.complex64)
    kz = jnp.fft.fftn(z, axes=(-2, -1))
    kspace = jnp.stack([kz.real, kz.imag], axis=2).reshape(N, C, H, W).astype(jnp.float32)
    k = convt(kspace, w_kspace)
    bz = jnp.fft.ifftn(k[:, 0] + 1j * k[:, 1], axes=(-2, -1))
    backward = jnp.stack([bz.real, bz.imag], axis=1).astype(jnp.float32)
    img = convt(image, w_image)
    return jnp.concatenate([img, backward], axis=1)


if __name__ == "__main__":
    key = jax.random.PRNGKey(0)
    k_img, k_w1, k_w2 = jax.random.split(key, 3)

    N, C, H, W = 2, 4, 16, 16
    in_channels, out_channels = 4, 4
    image = jax.random.normal(k_img, (N, C, H, W), dtype=jnp.float32)

    # Deterministic ConvTranspose2d weights, PyTorch layout (Cin, Cout, kH, kW).
    bound = 1.0 / (in_channels * 2 * 2) ** 0.5
    w_image = jax.random.uniform(k_w1, (in_channels, out_channels // 2, 2, 2),
                                 jnp.float32, -bound, bound)
    w_kspace = jax.random.uniform(k_w2, (in_channels, out_channels // 2, 2, 2),
                                  jnp.float32, -bound, bound)

    out = jax.jit(multidomain_conv_transpose2d)(image, w_image, w_kspace)
    out = jax.block_until_ready(out)

    assert out.shape == (N, out_channels, 2 * H, 2 * W), out.shape

    ref = reference_forward(image, w_image, w_kspace)
    max_err = float(jnp.max(jnp.abs(out - ref)))
    # bf16 MXU operands (f32 accumulation) through fft2 -> conv -> ifft2: allow
    # a few percent of the output scale; a structural bug would give O(1) error.
    assert max_err < 1e-1, f"max abs error vs reference: {max_err}"

    print("KERNEL_OK")
</pallas_src>

<mosaic_0001>
module attributes {stable_mosaic.version = 11 : i64} {
  func.func @kernel(%arg0: i32, %arg1: memref<64x32xf32, #tpu.memory_space<vmem>>, %arg2: memref<32x32xbf16, #tpu.memory_space<vmem>>, %arg3: memref<32x32xbf16, #tpu.memory_space<vmem>>, %arg4: memref<32x64xf32, #tpu.memory_space<vmem>>) attributes {dimension_semantics = [#tpu.dimension_semantics<parallel>], iteration_bounds = array<i64: 1>, scalar_prefetch = 0 : i64, scratch_operands = 0 : i64, tpu.core_type = #tpu.core_type<tc>, window_params = [{transform_indices = @transform_0, window_bounds = array<i64: 64, 32>}, {pipeline_mode = #tpu.pipeline_mode<synchronous>, transform_indices = @transform_1, window_bounds = array<i64: 32, 32>}, {pipeline_mode = #tpu.pipeline_mode<synchronous>, transform_indices = @transform_2, window_bounds = array<i64: 32, 32>}, {transform_indices = @transform_3, window_bounds = array<i64: 32, 64>}]} {
    %c0 = arith.constant 0 : index
    %c0_0 = arith.constant 0 : index
    %0 = vector.load %arg1[%c0, %c0_0] : memref<64x32xf32, #tpu.memory_space<vmem>>, vector<64x32xf32>
    %1 = arith.truncf %0 : vector<64x32xf32> to vector<64x32xbf16>
    %c0_1 = arith.constant 0 : index
    %c0_2 = arith.constant 0 : index
    %2 = vector.load %arg2[%c0_1, %c0_2] : memref<32x32xbf16, #tpu.memory_space<vmem>>, vector<32x32xbf16>
    %cst = arith.constant dense<0.000000e+00> : vector<64x32xf32>
    %3 = tpu.matmul %1, %2, %cst {dimension_numbers = #tpu.dot_dimension_numbers<[1], [0], [0], [1], [0, 0, 1, 1], [], []>} : vector<64x32xbf16>, vector<32x32xbf16>, vector<64x32xf32> -> vector<64x32xf32>
    %4 = vector.extract_strided_slice %3 {offsets = [0, 0], sizes = [64, 16], strides = [1, 1]} : vector<64x32xf32> to vector<64x16xf32>
    %5 = vector.extract_strided_slice %3 {offsets = [0, 16], sizes = [64, 16], strides = [1, 1]} : vector<64x32xf32> to vector<64x16xf32>
    %6 = vector.extract_strided_slice %4 {offsets = [0, 0], sizes = [16, 16], strides = [1, 1]} : vector<64x16xf32> to vector<16x16xf32>
    %7 = vector.extract_strided_slice %4 {offsets = [16, 0], sizes = [16, 16], strides = [1, 1]} : vector<64x16xf32> to vector<16x16xf32>
    %8 = vector.extract_strided_slice %4 {offsets = [32, 0], sizes = [16, 16], strides = [1, 1]} : vector<64x16xf32> to vector<16x16xf32>
    %9 = vector.extract_strided_slice %4 {offsets = [48, 0], sizes = [16, 16], strides = [1, 1]} : vector<64x16xf32> to vector<16x16xf32>
    %10 = tpu.concatenate %6, %7, %8, %9 in 1 : vector<16x16xf32>, vector<16x16xf32>, vector<16x16xf32>, vector<16x16xf32> -> vector<16x64xf32>
    %11 = vector.extract_strided_slice %5 {offsets = [0, 0], sizes = [16, 16], strides = [1, 1]} : vector<64x16xf32> to vector<16x16xf32>
    %12 = vector.extract_strided_slice %5 {offsets = [16, 0], sizes = [16, 16], strides = [1, 1]} : vector<64x16xf32> to vector<16x16xf32>
    %13 = vector.extract_strided_slice %5 {offsets = [32, 0], sizes = [16, 16], strides = [1, 1]} : vector<64x16xf32> to vector<16x16xf32>
    %14 = vector.extract_strided_slice %5 {offsets = [48, 0], sizes = [16, 16], strides = [1, 1]} : vector<64x16xf32> to vector<16x16xf32>
    %15 = tpu.concatenate %11, %12, %13, %14 in 1 : vector<16x16xf32>, vector<16x16xf32>, vector<16x16xf32>, vector<16x16xf32> -> vector<16x64xf32>
    %16 = tpu.concatenate %10, %15 in 0 : vector<16x64xf32>, vector<16x64xf32> -> vector<32x64xf32>
    %c0_3 = arith.constant 0 : index
    %c0_4 = arith.constant 0 : index
    %17 = vector.load %arg3[%c0_3, %c0_4] : memref<32x32xbf16, #tpu.memory_space<vmem>>, vector<32x32xbf16>
    %18 = arith.truncf %16 : vector<32x64xf32> to vector<32x64xbf16>
    %cst_5 = arith.constant dense<0.000000e+00> : vector<32x64xf32>
    %19 = tpu.matmul %17, %18, %cst_5 {dimension_numbers = #tpu.dot_dimension_numbers<[1], [0], [0], [1], [0, 0, 1, 1], [], []>} : vector<32x32xbf16>, vector<32x64xbf16>, vector<32x64xf32> -> vector<32x64xf32>
    %c0_6 = arith.constant 0 : index
    %c0_7 = arith.constant 0 : index
    %20 = vector.load %arg4[%c0_6, %c0_7] : memref<32x64xf32, #tpu.memory_space<vmem>>, vector<32x64xf32>
    tpu.vector_store %arg4[%c0_6, %c0_7], %19 {strides = array<i32>} : memref<32x64xf32, #tpu.memory_space<vmem>>, vector<32x64xf32>,
    return
  }
  func.func @transform_0(%arg0: i32) -> (i32, i32) {
    %c0_i32 = arith.constant 0 : i32
    %c0_i32_0 = arith.constant 0 : i32
    return %arg0, %c0_i32 : i32, i32
  }
  func.func @transform_1(%arg0: i32) -> (i32, i32) {
    %c0_i32 = arith.constant 0 : i32
    %c0_i32_0 = arith.constant 0 : i32
    %c0_i32_1 = arith.constant 0 : i32
    return %c0_i32, %c0_i32_0 : i32, i32
  }
  func.func @transform_2(%arg0: i32) -> (i32, i32) {
    %c0_i32 = arith.constant 0 : i32
    %c0_i32_0 = arith.constant 0 : i32
    %c0_i32_1 = arith.constant 0 : i32
    return %c0_i32, %c0_i32_0 : i32, i32
  }
  func.func @transform_3(%arg0: i32) -> (i32, i32) {
    %c0_i32 = arith.constant 0 : i32
    %c0_i32_0 = arith.constant 0 : i32
    return %c0_i32, %arg0 : i32, i32
  }
}

module attributes {stable_mosaic.version = 11 : i64} {
  func.func @_convT_kernel(%arg0: i32, %arg1: memref<8x4xbf16, #tpu.memory_space<vmem>>, %arg2: memref<4x512xf32, #tpu.memory_space<vmem>>, %arg3: memref<8x512xf32, #tpu.memory_space<vmem>>) attributes {dimension_semantics = [#tpu.dimension_semantics<parallel>], iteration_bounds = array<i64: 1>, scalar_prefetch = 0 : i64, scratch_operands = 0 : i64, tpu.core_type = #tpu.core_type<tc>, window_params = [{pipeline_mode = #tpu.pipeline_mode<synchronous>, transform_indices = @transform_0, window_bounds = array<i64: 8, 4>}, {transform_indices = @transform_1, window_bounds = array<i64: 4, 512>}, {transform_indices = @transform_2, window_bounds = array<i64: 8, 512>}]} {
    %c0 = arith.constant 0 : index
    %c0_0 = arith.constant 0 : index
    %0 = vector.load %arg1[%c0, %c0_0] : memref<8x4xbf16, #tpu.memory_space<vmem>>, vector<8x4xbf16>
    %c0_1 = arith.constant 0 : index
    %c0_2 = arith.constant 0 : index
    %1 = vector.load %arg2[%c0_1, %c0_2] : memref<4x512xf32, #tpu.memory_space<vmem>>, vector<4x512xf32>
    %2 = arith.truncf %1 : vector<4x512xf32> to vector<4x512xbf16>
    %cst = arith.constant dense<0.000000e+00> : vector<8x512xf32>
    %3 = tpu.matmul %0, %2, %cst {dimension_numbers = #tpu.dot_dimension_numbers<[1], [0], [0], [1], [0, 0, 1, 1], [], []>} : vector<8x4xbf16>, vector<4x512xbf16>, vector<8x512xf32> -> vector<8x512xf32>
    %c0_3 = arith.constant 0 : index
    %c0_4 = arith.constant 0 : index
    %4 = vector.load %arg3[%c0_3, %c0_4] : memref<8x512xf32, #tpu.memory_space<vmem>>, vector<8x512xf32>
    tpu.vector_store %arg3[%c0_3, %c0_4], %3 {strides = array<i32>} : memref<8x512xf32, #tpu.memory_space<vmem>>, vector<8x512xf32>,
    return
  }
  func.func @transform_0(%arg0: i32) -> (i32, i32) {
    %c0_i32 = arith.constant 0 : i32
    %c0_i32_0 = arith.constant 0 : i32
    %c0_i32_1 = arith.constant 0 : i32
    return %c0_i32, %c0_i32_0 : i32, i32
  }
  func.func @transform_1(%arg0: i32) -> (i32, i32) {
    %c0_i32 = arith.constant 0 : i32
    %c0_i32_0 = arith.constant 0 : i32
    return %c0_i32, %arg0 : i32, i32
  }
  func.func @transform_2(%arg0: i32) -> (i32, i32) {
    %c0_i32 = arith.constant 0 : i32
    %c0_i32_0 = arith.constant 0 : i32
    return %c0_i32, %arg0 : i32, i32
  }
}

module attributes {stable_mosaic.version = 11 : i64} {
  func.func @kernel(%arg0: i32, %arg1: memref<64x64xf32, #tpu.memory_space<vmem>>, %arg2: memref<64x64xbf16, #tpu.memory_space<vmem>>, %arg3: memref<64x64xbf16, #tpu.memory_space<vmem>>, %arg4: memref<64x64xf32, #tpu.memory_space<vmem>>) attributes {dimension_semantics = [#tpu.dimension_semantics<parallel>], iteration_bounds = array<i64: 1>, scalar_prefetch = 0 : i64, scratch_operands = 0 : i64, tpu.core_type = #tpu.core_type<tc>, window_params = [{transform_indices = @transform_0, window_bounds = array<i64: 64, 64>}, {pipeline_mode = #tpu.pipeline_mode<synchronous>, transform_indices = @transform_1, window_bounds = array<i64: 64, 64>}, {pipeline_mode = #tpu.pipeline_mode<synchronous>, transform_indices = @transform_2, window_bounds = array<i64: 64, 64>}, {transform_indices = @transform_3, window_bounds = array<i64: 64, 64>}]} {
    %c0 = arith.constant 0 : index
    %c0_0 = arith.constant 0 : index
    %0 = vector.load %arg1[%c0, %c0_0] : memref<64x64xf32, #tpu.memory_space<vmem>>, vector<64x64xf32>
    %1 = arith.truncf %0 : vector<64x64xf32> to vector<64x64xbf16>
    %c0_1 = arith.constant 0 : index
    %c0_2 = arith.constant 0 : index
    %2 = vector.load %arg2[%c0_1, %c0_2] : memref<64x64xbf16, #tpu.memory_space<vmem>>, vector<64x64xbf16>
    %cst = arith.constant dense<0.000000e+00> : vector<64x64xf32>
    %3 = tpu.matmul %1, %2, %cst {dimension_numbers = #tpu.dot_dimension_numbers<[1], [0], [0], [1], [0, 0, 1, 1], [], []>} : vector<64x64xbf16>, vector<64x64xbf16>, vector<64x64xf32> -> vector<64x64xf32>
    %4 = vector.extract_strided_slice %3 {offsets = [0, 0], sizes = [64, 32], strides = [1, 1]} : vector<64x64xf32> to vector<64x32xf32>
    %5 = vector.extract_strided_slice %3 {offsets = [0, 32], sizes = [64, 32], strides = [1, 1]} : vector<64x64xf32> to vector<64x32xf32>
    %6 = vector.extract_strided_slice %4 {offsets = [0, 0], sizes = [32, 32], strides = [1, 1]} : vector<64x32xf32> to vector<32x32xf32>
    %7 = vector.extract_strided_slice %4 {offsets = [32, 0], sizes = [32, 32], strides = [1, 1]} : vector<64x32xf32> to vector<32x32xf32>
    %8 = tpu.concatenate %6, %7 in 1 : vector<32x32xf32>, vector<32x32xf32> -> vector<32x64xf32>
    %9 = vector.extract_strided_slice %5 {offsets = [0, 0], sizes = [32, 32], strides = [1, 1]} : vector<64x32xf32> to vector<32x32xf32>
    %10 = vector.extract_strided_slice %5 {offsets = [32, 0], sizes = [32, 32], strides = [1, 1]} : vector<64x32xf32> to vector<32x32xf32>
    %11 = tpu.concatenate %9, %10 in 1 : vector<32x32xf32>, vector<32x32xf32> -> vector<32x64xf32>
    %12 = tpu.concatenate %8, %11 in 0 : vector<32x64xf32>, vector<32x64xf32> -> vector<64x64xf32>
    %c0_3 = arith.constant 0 : index
    %c0_4 = arith.constant 0 : index
    %13 = vector.load %arg3[%c0_3, %c0_4] : memref<64x64xbf16, #tpu.memory_space<vmem>>, vector<64x64xbf16>
    %14 = arith.truncf %12 : vector<64x64xf32> to vector<64x64xbf16>
    %cst_5 = arith.constant dense<0.000000e+00> : vector<64x64xf32>
    %15 = tpu.matmul %13, %14, %cst_5 {dimension_numbers = #tpu.dot_dimension_numbers<[1], [0], [0], [1], [0, 0, 1, 1], [], []>} : vector<64x64xbf16>, vector<64x64xbf16>, vector<64x64xf32> -> vector<64x64xf32>
    %c0_6 = arith.constant 0 : index
    %c0_7 = arith.constant 0 : index
    %16 = vector.load %arg4[%c0_6, %c0_7] : memref<64x64xf32, #tpu.memory_space<vmem>>, vector<64x64xf32>
    tpu.vector_store %arg4[%c0_6, %c0_7], %15 {strides = array<i32>} : memref<64x64xf32, #tpu.memory_space<vmem>>, vector<64x64xf32>,
    return
  }
  func.func @transform_0(%arg0: i32) -> (i32, i32) {
    %c0_i32 = arith.constant 0 : i32
    %c0_i32_0 = arith.constant 0 : i32
    return %arg0, %c0_i32 : i32, i32
  }
  func.func @transform_1(%arg0: i32) -> (i32, i32) {
    %c0_i32 = arith.constant 0 : i32
    %c0_i32_0 = arith.constant 0 : i32
    %c0_i32_1 = arith.constant 0 : i32
    return %c0_i32, %c0_i32_0 : i32, i32
  }
  func.func @transform_2(%arg0: i32) -> (i32, i32) {
    %c0_i32 = arith.constant 0 : i32
    %c0_i32_0 = arith.constant 0 : i32
    %c0_i32_1 = arith.constant 0 : i32
    return %c0_i32, %c0_i32_0 : i32, i32
  }
  func.func @transform_3(%arg0: i32) -> (i32, i32) {
    %c0_i32 = arith.constant 0 : i32
    %c0_i32_0 = arith.constant 0 : i32
    return %c0_i32, %arg0 : i32, i32
  }
}

</mosaic_0001>

<llo_original>
// kernel: multidomain_conv_transpose2d.4
$region0: #{multidomain_conv_transpose2d.4}
  #allocation0 [shape = 'u32[]', space=smem, size = 0x4, offset = 0x4, fixed_abs, tag = 'smem constant byte address 0x4 - core index']
  #allocation1 [shape = 'u32[72,128]{1,0:T(1,128)}', space=vmem, size = 0x9000, scoped, tag = 'internal scratch']
  %s0 = inlined_call_operand.vmem [shape: f32[64,32], index: 0, kind: input, shape index: {}]
  %s1 = inlined_call_operand.vmem [shape: bf16[32,32], index: 1, kind: input, shape index: {}]
  %s2 = inlined_call_operand.vmem [shape: bf16[32,32], index: 2, kind: input, shape index: {}]
  %s3 = inlined_call_operand.vmem [shape: f32[32,64], index: 3, kind: output, shape index: {}]
  %s4 = sld [smem:[#allocation0]]
  $region22: #{multidomain_conv_transpose2d.4} parent=0
    _
  %s6 = ssub.s32 1, %s4
  %s7 = scalar_select 0, %s6, %s4
  // Predicated region
  $region2: #{multidomain_conv_transpose2d.4} parent=0 // pred_check
    _
  $region3: #{multidomain_conv_transpose2d.4} parent=0 // pred_check_branch
    %9 = sbr.rel (0) target = $region5
  $region4: #{multidomain_conv_transpose2d.4} parent=0 // pred_region
    _
  $region5: #{multidomain_conv_transpose2d.4} parent=0 // pred_fallthru
    _
  // Predicated region
  $region6: #{multidomain_conv_transpose2d.4} parent=0 // pred_check
    _
  $region7: #{multidomain_conv_transpose2d.4} parent=0 // pred_check_branch
    %11 = sbr.rel (0) target = $region9
  $region8: #{multidomain_conv_transpose2d.4} parent=0 // pred_region
    _
  $region9: #{multidomain_conv_transpose2d.4} parent=0 // pred_fallthru
    _
  // Predicated region
  $region10: #{multidomain_conv_transpose2d.4} parent=0 // pred_check
    _
  $region11: #{multidomain_conv_transpose2d.4} parent=0 // pred_check_branch
    %13 = sbr.rel (0) target = $region13
  $region12: #{multidomain_conv_transpose2d.4} parent=0 // pred_region
    _
  $region13: #{multidomain_conv_transpose2d.4} parent=0 // pred_fallthru
    _
  %v15 = vld [vmem:[%s0] sm:$0xff]
  %v16 = vld [vmem:[%s0 + $0x8] sm:$0xff]
  %v17 = vld [vmem:[%s0 + $0x10] sm:$0xff]
  %v18 = vld [vmem:[%s0 + $0x18] sm:$0xff]
  %v19 = vld [vmem:[%s0 + $0x20] sm:$0xff]
  %v20 = vld [vmem:[%s0 + $0x28] sm:$0xff]
  %v21 = vld [vmem:[%s0 + $0x30] sm:$0xff]
  %v22 = vld [vmem:[%s0 + $0x38] sm:$0xff]
  %v23 = vpack.c.bf16 %v16, %v15
  %v24 = vpack.c.bf16 %v18, %v17
  %v25 = vpack.c.bf16 %v20, %v19
  %v26 = vpack.c.bf16 %v22, %v21
  %v27 = vld [vmem:[%s1] sm:$0xf]
  %v28 = vld [vmem:[%s1 + $0x4] sm:$0xf]
  %v29 = vld [vmem:[%s1 + $0x8] sm:$0xf]
  %v30 = vld [vmem:[%s1 + $0xc] sm:$0xf]
  %v35 = vunpack.c.l.b16 %v27
  %v36 = vunpack.c.l.b16 %v28
  %v37 = vunpack.c.l.b16 %v29
  %v38 = vunpack.c.l.b16 %v30
  %v39 = vpack.c.b16 %v36, %v35
  %v40 = vpack.c.b16 %v38, %v37
  %vm43 = vcmask 261120
  %v45 = vsel %vm43, %v23, 0
  %v48 = vsel %vm43, %v24, 0
  %v51 = vsel %vm43, %v25, 0
  %v54 = vsel %vm43, %v26, 0
  %56 = vmatpush.bf16.msra.mxu0 0
  %57 = vmatpush.bf16.msra.mxu0 0
  %58 = vmatpush.bf16.msra.mxu0 0
  %59 = vmatpush.bf16.msra.mxu0 0
  %60 = vmatpush.bf16.msra.mxu0 0
  %61 = vmatpush.bf16.msra.mxu0 0
  %62 = vmatpush.bf16.msra.mxu0 %v40
  %63 = vmatpush.bf16.msra.mxu0 %v39
  %64 = vmatmul.bf16.gmra.mxu0 %v45
  %v65 = vpop.f32.mrf.mxu0
  %v66 = vadd.f32 0.0, %v65
  %v67 = vpop.f32.mrf.mxu0
  %v68 = vadd.f32 0.0, %v67
  %69 = vmatmul.bf16.gmra.mxu0 %v48
  %v70 = vpop.f32.mrf.mxu0
  %v71 = vadd.f32 0.0, %v70
  %v72 = vpop.f32.mrf.mxu0
  %v73 = vadd.f32 0.0, %v72
  %74 = vmatmul.bf16.gmra.mxu0 %v51
  %v75 = vpop.f32.mrf.mxu0
  %v76 = vadd.f32 0.0, %v75
  %v77 = vpop.f32.mrf.mxu0
  %v78 = vadd.f32 0.0, %v77
  %79 = vmatmul.bf16.gmra.mxu0 %v54
  %v80 = vpop.f32.mrf.mxu0
  %v81 = vadd.f32 0.0, %v80
  %v82 = vpop.f32.mrf.mxu0
  %v83 = vadd.f32 0.0, %v82
  %84 = vdwg.mxu0
  %87 = vrot.lane.b32.xlu0 %v71, 16
  %v88 = vpop.permute.xlu0 %87
  %89 = vrot.lane.b32.xlu0 %v73, 16
  %v90 = vpop.permute.xlu0 %89
  %95 = vrot.lane.b32.xlu0 %v76, 32
  %v96 = vpop.permute.xlu0 %95
  %97 = vrot.lane.b32.xlu0 %v78, 32
  %v98 = vpop.permute.xlu0 %97
  %103 = vrot.lane.b32.xlu0 %v81, 48
  %v104 = vpop.permute.xlu0 %103
  %105 = vrot.lane.b32.xlu0 %v83, 48
  %v106 = vpop.permute.xlu0 %105
  %vm109 = vcmask 130048
  %v110 = vsel %vm109, %v66, %v88
  %v111 = vsel %vm109, %v68, %v90
  %v112 = vsel %vm43, %v110, %v96
  %v113 = vsel %vm43, %v111, %v98
  %vm114 = vcmask 392192
  %v115 = vsel %vm114, %v112, %v104
  %v116 = vsel %vm114, %v113, %v106
  %119 = vrot.lane.b32.xlu0 %v66, 112
  %v120 = vpop.permute.xlu0 %119
  %121 = vrot.lane.b32.xlu0 %v68, 112
  %v122 = vpop.permute.xlu0 %121
  %125 = vrot.lane.b32.xlu0 %v76, 16
  %v126 = vpop.permute.xlu0 %125
  %127 = vrot.lane.b32.xlu0 %v78, 16
  %v128 = vpop.permute.xlu0 %127
  %131 = vrot.lane.b32.xlu0 %v81, 32
  %v132 = vpop.permute.xlu0 %131
  %133 = vrot.lane.b32.xlu0 %v83, 32
  %v134 = vpop.permute.xlu0 %133
  %v137 = vsel %vm109, %v120, %v71
  %v138 = vsel %vm109, %v122, %v73
  %v139 = vsel %vm43, %v137, %v126
  %v140 = vsel %vm43, %v138, %v128
  %v141 = vsel %vm114, %v139, %v132
  %v142 = vsel %vm114, %v140, %v134
  %v143 = vld [vmem:[%s2] sm:$0xf]
  %v144 = vld [vmem:[%s2 + $0x4] sm:$0xf]
  %v145 = vld [vmem:[%s2 + $0x8] sm:$0xf]
  %v146 = vld [vmem:[%s2 + $0xc] sm:$0xf]
  %v147 = vpack.c.bf16 %v116, %v115
  %v148 = vpack.c.bf16 %v142, %v141
  %v153 = vunpack.c.l.b16 %v143
  %v154 = vunpack.c.l.b16 %v144
  %v155 = vunpack.c.l.b16 %v145
  %v156 = vunpack.c.l.b16 %v146
  %v157 = vpack.c.b16 %v154, %v153
  %v158 = vpack.c.b16 %v156, %v155
  %v160 = vsel %vm43, %v157, 0
  %v163 = vsel %vm43, %v158, 0
  %165 = vmatpush.bf16.msra.mxu0 0
  %166 = vmatpush.bf16.msra.mxu0 0
  %167 = vmatpush.bf16.msra.mxu0 0
  %168 = vmatpush.bf16.msra.mxu0 0
  %169 = vmatpush.bf16.msra.mxu0 0
  %170 = vmatpush.bf16.msra.mxu0 0
  %171 = vmatpush.bf16.msra.mxu0 %v148
  %172 = vmatpush.bf16.msra.mxu0 %v147
  %173 = vmatmul.bf16.gmra.mxu0 %v160
  %v174 = vpop.f32.mrf.mxu0
  %v175 = vadd.f32 0.0, %v174
  %v176 = vpop.f32.mrf.mxu0
  %v177 = vadd.f32 0.0, %v176
  %178 = vmatmul.bf16.gmra.mxu0 %v163
  %v179 = vpop.f32.mrf.mxu0
  %v180 = vadd.f32 0.0, %v179
  %v181 = vpop.f32.mrf.mxu0
  %v182 = vadd.f32 0.0, %v181
  %183 = vdwg.mxu0
  %vm184 = vcmask 523264
  %185 = vst.msk [vmem:[%s3] sm:$0xff] %vm184, %v175
  %186 = vst.msk [vmem:[%s3 + $0x8] sm:$0xff] %vm184, %v177
  %187 = vst.msk [vmem:[%s3 + $0x10] sm:$0xff] %vm184, %v180
  %188 = vst.msk [vmem:[%s3 + $0x18] sm:$0xff] %vm184, %v182
  // Predicated region
  $region14: #{multidomain_conv_transpose2d.4} parent=0 // pred_check
    _
  $region15: #{multidomain_conv_transpose2d.4} parent=0 // pred_check_branch
    %190 = sbr.rel (0) target = $region17
  $region16: #{multidomain_conv_transpose2d.4} parent=0 // pred_region
    _
  $region17: #{multidomain_conv_transpose2d.4} parent=0 // pred_fallthru
    _
  // Predicated region
  $region18: #{multidomain_conv_transpose2d.4} parent=0 // pred_check
    _
  $region19: #{multidomain_conv_transpose2d.4} parent=0 // pred_check_branch
    %192 = sbr.rel (0) target = $region21
  $region20: #{multidomain_conv_transpose2d.4} parent=0 // pred_region
    _
  $region21: #{multidomain_conv_transpose2d.4} parent=0 // pred_fallthru
    _

// kernel: multidomain_conv_transpose2d.5
$region0: #{multidomain_conv_transpose2d.5}
  #allocation0 [shape = 'u32[]', space=smem, size = 0x4, offset = 0x4, fixed_abs, tag = 'smem constant byte address 0x4 - core index']
  #allocation1 [shape = 'u32[72,128]{1,0:T(1,128)}', space=vmem, size = 0x9000, scoped, tag = 'internal scratch']
  %s0 = inlined_call_operand.vmem [shape: bf16[8,4], index: 0, kind: input, shape index: {}]
  %s1 = inlined_call_operand.vmem [shape: f32[4,512], index: 1, kind: input, shape index: {}]
  %s2 = inlined_call_operand.vmem [shape: f32[8,512], index: 2, kind: output, shape index: {}]
  %s3 = sld [smem:[#allocation0]]
  $region18: #{multidomain_conv_transpose2d.5} parent=0
    _
  %s5 = ssub.s32 1, %s3
  %s6 = scalar_select 0, %s5, %s3
  // Predicated region
  $region2: #{multidomain_conv_transpose2d.5} parent=0 // pred_check
    _
  $region3: #{multidomain_conv_transpose2d.5} parent=0 // pred_check_branch
    %8 = sbr.rel (0) target = $region5
  $region4: #{multidomain_conv_transpose2d.5} parent=0 // pred_region
    _
  $region5: #{multidomain_conv_transpose2d.5} parent=0 // pred_fallthru
    _
  // Predicated region
  $region6: #{multidomain_conv_transpose2d.5} parent=0 // pred_check
    _
  $region7: #{multidomain_conv_transpose2d.5} parent=0 // pred_check_branch
    %10 = sbr.rel (0) target = $region9
  $region8: #{multidomain_conv_transpose2d.5} parent=0 // pred_region
    _
  $region9: #{multidomain_conv_transpose2d.5} parent=0 // pred_fallthru
    _
  %v12 = vld [vmem:[%s0] sm:$0xf]
  %v13 = vld [vmem:[%s1] sm:$0xff]
  %v14 = vld [vmem:[%s1 + $0x8] sm:$0xff]
  %17 = vst [vmem:[#allocation1] ss:$2 sm:$0xff] %v13
  %s18 = scalar_lea.vmem [#allocation1], 16
  %19 = vst [vmem:[%s18] ss:$2 sm:$0xff] %v14
  %v20 = vld.sshfl [vmem:[#allocation1] sm:$0xff pattern:$0x75316420]
  %v21 = vld.sshfl [vmem:[#allocation1 + $0x8] sm:$0xff pattern:$0x75316420]
  %v22 = vld.sshfl [vmem:[#allocation1 + $0x10] sm:$0xff pattern:$0x75316420]
  %v23 = vld.sshfl [vmem:[#allocation1 + $0x18] sm:$0xff pattern:$0x75316420]
  %v28 = vpack.c.bf16 %v20, %v20
  %v29 = vpack.c.bf16 %v21, %v21
  %v30 = vpack.c.bf16 %v22, %v22
  %v31 = vpack.c.bf16 %v23, %v23
  %vm32 = vcmask 31744
  %v34 = vsel %vm32, %v12, 0
  %vm36 = vcmask 1041408
  %v38 = vsel %vm36, %v28, 0
  %v41 = vsel %vm36, %v29, 0
  %v44 = vsel %vm36, %v30, 0
  %v47 = vsel %vm36, %v31, 0
  %49 = vmatpush.bf16.msra.mxu0 0
  %50 = vmatpush.bf16.msra.mxu0 0
  %51 = vmatpush.bf16.msra.mxu0 0
  %52 = vmatpush.bf16.msra.mxu0 0
  %53 = vmatpush.bf16.msra.mxu0 0
  %54 = vmatpush.bf16.msra.mxu0 0
  %55 = vmatpush.bf16.msra.mxu0 0
  %56 = vmatpush.bf16.msra.mxu0 %v38
  %57 = vmatmul.bf16.gmra.mxu0 %v34
  %v58 = vpop.f32.mrf.mxu0
  %v59 = vadd.f32 0.0, %v58
  %v60 = vpop.f32.mrf.mxu0
  %61 = vdwg.mxu0
  %62 = vmatpush.bf16.msra.mxu0 0
  %63 = vmatpush.bf16.msra.mxu0 0
  %64 = vmatpush.bf16.msra.mxu0 0
  %65 = vmatpush.bf16.msra.mxu0 0
  %66 = vmatpush.bf16.msra.mxu0 0
  %67 = vmatpush.bf16.msra.mxu0 0
  %68 = vmatpush.bf16.msra.mxu0 0
  %69 = vmatpush.bf16.msra.mxu0 %v41
  %70 = vmatmul.bf16.gmra.mxu0 %v34
  %v71 = vpop.f32.mrf.mxu0
  %v72 = vadd.f32 0.0, %v71
  %v73 = vpop.f32.mrf.mxu0
  %74 = vdwg.mxu0
  %75 = vmatpush.bf16.msra.mxu0 0
  %76 = vmatpush.bf16.msra.mxu0 0
  %77 = vmatpush.bf16.msra.mxu0 0
  %78 = vmatpush.bf16.msra.mxu0 0
  %79 = vmatpush.bf16.msra.mxu0 0
  %80 = vmatpush.bf16.msra.mxu0 0
  %81 = vmatpush.bf16.msra.mxu0 0
  %82 = vmatpush.bf16.msra.mxu0 %v44
  %83 = vmatmul.bf16.gmra.mxu0 %v34
  %v84 = vpop.f32.mrf.mxu0
  %v85 = vadd.f32 0.0, %v84
  %v86 = vpop.f32.mrf.mxu0
  %87 = vdwg.mxu0
  %88 = vmatpush.bf16.msra.mxu0 0
  %89 = vmatpush.bf16.msra.mxu0 0
  %90 = vmatpush.bf16.msra.mxu0 0
  %91 = vmatpush.bf16.msra.mxu0 0
  %92 = vmatpush.bf16.msra.mxu0 0
  %93 = vmatpush.bf16.msra.mxu0 0
  %94 = vmatpush.bf16.msra.mxu0 0
  %95 = vmatpush.bf16.msra.mxu0 %v47
  %96 = vmatmul.bf16.gmra.mxu0 %v34
  %v97 = vpop.f32.mrf.mxu0
  %v98 = vadd.f32 0.0, %v97
  %v99 = vpop.f32.mrf.mxu0
  %100 = vdwg.mxu0
  %101 = vst [vmem:[%s2] sm:$0xff] %v59
  %102 = vst [vmem:[%s2 + $0x8] sm:$0xff] %v72
  %103 = vst [vmem:[%s2 + $0x10] sm:$0xff] %v85
  %104 = vst [vmem:[%s2 + $0x18] sm:$0xff] %v98
  // Predicated region
  $region10: #{multidomain_conv_transpose2d.5} parent=0 // pred_check
    _
  $region11: #{multidomain_conv_transpose2d.5} parent=0 // pred_check_branch
    %106 = sbr.rel (0) target = $region13
  $region12: #{multidomain_conv_transpose2d.5} parent=0 // pred_region
    _
  $region13: #{multidomain_conv_transpose2d.5} parent=0 // pred_fallthru
    _
  // Predicated region
  $region14: #{multidomain_conv_transpose2d.5} parent=0 // pred_check
    _
  $region15: #{multidomain_conv_transpose2d.5} parent=0 // pred_check_branch
    %108 = sbr.rel (0) target = $region17
  $region16: #{multidomain_conv_transpose2d.5} parent=0 // pred_region
    _
  $region17: #{multidomain_conv_transpose2d.5} parent=0 // pred_fallthru
    _

// kernel: multidomain_conv_transpose2d.6
$region0: #{multidomain_conv_transpose2d.6}
  #allocation0 [shape = 'u32[]', space=smem, size = 0x4, offset = 0x4, fixed_abs, tag = 'smem constant byte address 0x4 - core index']
  #allocation1 [shape = 'u32[72,128]{1,0:T(1,128)}', space=vmem, size = 0x9000, scoped, tag = 'internal scratch']
  %s0 = inlined_call_operand.vmem [shape: f32[64,64], index: 0, kind: input, shape index: {}]
  %s1 = inlined_call_operand.vmem [shape: bf16[64,64], index: 1, kind: input, shape index: {}]
  %s2 = inlined_call_operand.vmem [shape: bf16[64,64], index: 2, kind: input, shape index: {}]
  %s3 = inlined_call_operand.vmem [shape: f32[64,64], index: 3, kind: output, shape index: {}]
  %s4 = sld [smem:[#allocation0]]
  $region22: #{multidomain_conv_transpose2d.6} parent=0
    _
  %s6 = ssub.s32 1, %s4
  %s7 = scalar_select 0, %s6, %s4
  // Predicated region
  $region2: #{multidomain_conv_transpose2d.6} parent=0 // pred_check
    _
  $region3: #{multidomain_conv_transpose2d.6} parent=0 // pred_check_branch
    %9 = sbr.rel (0) target = $region5
  $region4: #{multidomain_conv_transpose2d.6} parent=0 // pred_region
    _
  $region5: #{multidomain_conv_transpose2d.6} parent=0 // pred_fallthru
    _
  // Predicated region
  $region6: #{multidomain_conv_transpose2d.6} parent=0 // pred_check
    _
  $region7: #{multidomain_conv_transpose2d.6} parent=0 // pred_check_branch
    %11 = sbr.rel (0) target = $region9
  $region8: #{multidomain_conv_transpose2d.6} parent=0 // pred_region
    _
  $region9: #{multidomain_conv_transpose2d.6} parent=0 // pred_fallthru
    _
  // Predicated region
  $region10: #{multidomain_conv_transpose2d.6} parent=0 // pred_check
    _
  $region11: #{multidomain_conv_transpose2d.6} parent=0 // pred_check_branch
    %13 = sbr.rel (0) target = $region13
  $region12: #{multidomain_conv_transpose2d.6} parent=0 // pred_region
    _
  $region13: #{multidomain_conv_transpose2d.6} parent=0 // pred_fallthru
    _
  %v15 = vld [vmem:[%s0] sm:$0xff]
  %v16 = vld [vmem:[%s0 + $0x8] sm:$0xff]
  %v17 = vld [vmem:[%s0 + $0x10] sm:$0xff]
  %v18 = vld [vmem:[%s0 + $0x18] sm:$0xff]
  %v19 = vld [vmem:[%s0 + $0x20] sm:$0xff]
  %v20 = vld [vmem:[%s0 + $0x28] sm:$0xff]
  %v21 = vld [vmem:[%s0 + $0x30] sm:$0xff]
  %v22 = vld [vmem:[%s0 + $0x38] sm:$0xff]
  %v23 = vpack.c.bf16 %v16, %v15
  %v24 = vpack.c.bf16 %v18, %v17
  %v25 = vpack.c.bf16 %v20, %v19
  %v26 = vpack.c.bf16 %v22, %v21
  %v27 = vld [vmem:[%s1] sm:$0xf]
  %v28 = vld [vmem:[%s1 + $0x4] sm:$0xf]
  %v29 = vld [vmem:[%s1 + $0x8] sm:$0xf]
  %v30 = vld [vmem:[%s1 + $0xc] sm:$0xf]
  %v31 = vld [vmem:[%s1 + $0x10] sm:$0xf]
  %v32 = vld [vmem:[%s1 + $0x14] sm:$0xf]
  %v33 = vld [vmem:[%s1 + $0x18] sm:$0xf]
  %v34 = vld [vmem:[%s1 + $0x1c] sm:$0xf]
  %v43 = vunpack.c.l.b16 %v27
  %v44 = vunpack.c.l.b16 %v28
  %v45 = vunpack.c.l.b16 %v29
  %v46 = vunpack.c.l.b16 %v30
  %v47 = vunpack.c.l.b16 %v31
  %v48 = vunpack.c.l.b16 %v32
  %v49 = vunpack.c.l.b16 %v33
  %v50 = vunpack.c.l.b16 %v34
  %v51 = vpack.c.b16 %v44, %v43
  %v52 = vpack.c.b16 %v46, %v45
  %v53 = vpack.c.b16 %v48, %v47
  %v54 = vpack.c.b16 %v50, %v49
  %vm59 = vcmask 523264
  %v61 = vsel %vm59, %v23, 0
  %v64 = vsel %vm59, %v24, 0
  %v67 = vsel %vm59, %v25, 0
  %v70 = vsel %vm59, %v26, 0
  %72 = vmatpush.bf16.msra.mxu0 0
  %73 = vmatpush.bf16.msra.mxu0 0
  %74 = vmatpush.bf16.msra.mxu0 0
  %75 = vmatpush.bf16.msra.mxu0 0
  %76 = vmatpush.bf16.msra.mxu0 %v54
  %77 = vmatpush.bf16.msra.mxu0 %v53
  %78 = vmatpush.bf16.msra.mxu0 %v52
  %79 = vmatpush.bf16.msra.mxu0 %v51
  %80 = vmatmul.bf16.gmra.mxu0 %v61
  %v81 = vpop.f32.mrf.mxu0
  %v82 = vadd.f32 0.0, %v81
  %v83 = vpop.f32.mrf.mxu0
  %v84 = vadd.f32 0.0, %v83
  %85 = vmatmul.bf16.gmra.mxu0 %v64
  %v86 = vpop.f32.mrf.mxu0
  %v87 = vadd.f32 0.0, %v86
  %v88 = vpop.f32.mrf.mxu0
  %v89 = vadd.f32 0.0, %v88
  %90 = vmatmul.bf16.gmra.mxu0 %v67
  %v91 = vpop.f32.mrf.mxu0
  %v92 = vadd.f32 0.0, %v91
  %v93 = vpop.f32.mrf.mxu0
  %v94 = vadd.f32 0.0, %v93
  %95 = vmatmul.bf16.gmra.mxu0 %v70
  %v96 = vpop.f32.mrf.mxu0
  %v97 = vadd.f32 0.0, %v96
  %v98 = vpop.f32.mrf.mxu0
  %v99 = vadd.f32 0.0, %v98
  %100 = vdwg.mxu0
  %105 = vrot.lane.b32.xlu0 %v92, 32
  %v106 = vpop.permute.xlu0 %105
  %107 = vrot.lane.b32.xlu0 %v94, 32
  %v108 = vpop.permute.xlu0 %107
  %109 = vrot.lane.b32.xlu0 %v97, 32
  %v110 = vpop.permute.xlu0 %109
  %111 = vrot.lane.b32.xlu0 %v99, 32
  %v112 = vpop.permute.xlu0 %111
  %vm117 = vcmask 261120
  %v118 = vsel %vm117, %v82, %v106
  %v119 = vsel %vm117, %v84, %v108
  %v120 = vsel %vm117, %v87, %v110
  %v121 = vsel %vm117, %v89, %v112
  %126 = vrot.lane.b32.xlu0 %v82, 96
  %v127 = vpop.permute.xlu0 %126
  %128 = vrot.lane.b32.xlu0 %v84, 96
  %v129 = vpop.permute.xlu0 %128
  %130 = vrot.lane.b32.xlu0 %v87, 96
  %v131 = vpop.permute.xlu0 %130
  %132 = vrot.lane.b32.xlu0 %v89, 96
  %v133 = vpop.permute.xlu0 %132
  %v138 = vsel %vm117, %v127, %v92
  %v139 = vsel %vm117, %v129, %v94
  %v140 = vsel %vm117, %v131, %v97
  %v141 = vsel %vm117, %v133, %v99
  %v142 = vld [vmem:[%s2] sm:$0xf]
  %v143 = vld [vmem:[%s2 + $0x4] sm:$0xf]
  %v144 = vld [vmem:[%s2 + $0x8] sm:$0xf]
  %v145 = vld [vmem:[%s2 + $0xc] sm:$0xf]
  %v146 = vld [vmem:[%s2 + $0x10] sm:$0xf]
  %v147 = vld [vmem:[%s2 + $0x14] sm:$0xf]
  %v148 = vld [vmem:[%s2 + $0x18] sm:$0xf]
  %v149 = vld [vmem:[%s2 + $0x1c] sm:$0xf]
  %v150 = vpack.c.bf16 %v119, %v118
  %v151 = vpack.c.bf16 %v121, %v120
  %v152 = vpack.c.bf16 %v139, %v138
  %v153 = vpack.c.bf16 %v141, %v140
  %v162 = vunpack.c.l.b16 %v142
  %v163 = vunpack.c.l.b16 %v143
  %v164 = vunpack.c.l.b16 %v144
  %v165 = vunpack.c.l.b16 %v145
  %v166 = vunpack.c.l.b16 %v146
  %v167 = vunpack.c.l.b16 %v147
  %v168 = vunpack.c.l.b16 %v148
  %v169 = vunpack.c.l.b16 %v149
  %v170 = vpack.c.b16 %v163, %v162
  %v171 = vpack.c.b16 %v165, %v164
  %v172 = vpack.c.b16 %v167, %v166
  %v173 = vpack.c.b16 %v169, %v168
  %v175 = vsel %vm59, %v170, 0
  %v178 = vsel %vm59, %v171, 0
  %v181 = vsel %vm59, %v172, 0
  %v184 = vsel %vm59, %v173, 0
  %186 = vmatpush.bf16.msra.mxu0 0
  %187 = vmatpush.bf16.msra.mxu0 0
  %188 = vmatpush.bf16.msra.mxu0 0
  %189 = vmatpush.bf16.msra.mxu0 0
  %190 = vmatpush.bf16.msra.mxu0 %v153
  %191 = vmatpush.bf16.msra.mxu0 %v152
  %192 = vmatpush.bf16.msra.mxu0 %v151
  %193 = vmatpush.bf16.msra.mxu0 %v150
  %194 = vmatmul.bf16.gmra.mxu0 %v175
  %v195 = vpop.f32.mrf.mxu0
  %v196 = vadd.f32 0.0, %v195
  %v197 = vpop.f32.mrf.mxu0
  %v198 = vadd.f32 0.0, %v197
  %199 = vmatmul.bf16.gmra.mxu0 %v178
  %v200 = vpop.f32.mrf.mxu0
  %v201 = vadd.f32 0.0, %v200
  %v202 = vpop.f32.mrf.mxu0
  %v203 = vadd.f32 0.0, %v202
  %204 = vmatmul.bf16.gmra.mxu0 %v181
  %v205 = vpop.f32.mrf.mxu0
  %v206 = vadd.f32 0.0, %v205
  %v207 = vpop.f32.mrf.mxu0
  %v208 = vadd.f32 0.0, %v207
  %209 = vmatmul.bf16.gmra.mxu0 %v184
  %v210 = vpop.f32.mrf.mxu0
  %v211 = vadd.f32 0.0, %v210
  %v212 = vpop.f32.mrf.mxu0
  %v213 = vadd.f32 0.0, %v212
  %214 = vdwg.mxu0
  %215 = vst.msk [vmem:[%s3] sm:$0xff] %vm59, %v196
  %216 = vst.msk [vmem:[%s3 + $0x8] sm:$0xff] %vm59, %v198
  %217 = vst.msk [vmem:[%s3 + $0x10] sm:$0xff] %vm59, %v201
  %218 = vst.msk [vmem:[%s3 + $0x18] sm:$0xff] %vm59, %v203
  %219 = vst.msk [vmem:[%s3 + $0x20] sm:$0xff] %vm59, %v206
  %220 = vst.msk [vmem:[%s3 + $0x28] sm:$0xff] %vm59, %v208
  %221 = vst.msk [vmem:[%s3 + $0x30] sm:$0xff] %vm59, %v211
  %222 = vst.msk [vmem:[%s3 + $0x38] sm:$0xff] %vm59, %v213
  // Predicated region
  $region14: #{multidomain_conv_transpose2d.6} parent=0 // pred_check
    _
  $region15: #{multidomain_conv_transpose2d.6} parent=0 // pred_check_branch
    %224 = sbr.rel (0) target = $region17
  $region16: #{multidomain_conv_transpose2d.6} parent=0 // pred_region
    _
  $region17: #{multidomain_conv_transpose2d.6} parent=0 // pred_fallthru
    _
  // Predicated region
  $region18: #{multidomain_conv_transpose2d.6} parent=0 // pred_check
    _
  $region19: #{multidomain_conv_transpose2d.6} parent=0 // pred_check_branch
    %226 = sbr.rel (0) target = $region21
  $region20: #{multidomain_conv_transpose2d.6} parent=0 // pred_region
    _
  $region21: #{multidomain_conv_transpose2d.6} parent=0 // pred_fallthru
    _

</llo_original>
